<compile_context>
chip_gen: v6e
topology: v6e:2x2x1
jax: 0.10.0
libtpu: 0.0.40
codegen_flags: <defaults>
</compile_context>

<pallas_src>
import functools

import jax
import jax.numpy as jnp
from jax.experimental import pallas as pl
from jax.experimental.pallas import tpu as pltpu


# ----------------------------- Pallas kernel ------------------------------ #

def _mlp_max_kernel(num_layers, ns, x_ref, *refs):
    """Per-tile: packed shared MLP (1x1 conv w/ folded BN+bias, ReLU), max over neighbors.

    x_ref:  (tile_groups * ns, G * C_in)  bf16   -- G centers packed along lanes
    params: per layer, W' (G*C_prev, G*C_l) bf16 block-diagonal, b' (1, G*C_l) f32
    out:    (tile_groups, G * C_out)      bf16
    """
    out_ref = refs[-1]
    params = refs[:-1]
    h = x_ref[...]                                   # bf16 MXU operand
    for l in range(num_layers):
        w = params[2 * l + 0][...]                   # block-diag folded weight (bf16)
        b = params[2 * l + 1][...]                   # folded bias+BN shift (f32)
        h = jnp.dot(h, w, preferred_element_type=jnp.float32) + b   # 1x1 conv on MXU
        h = jnp.maximum(h, 0.0)                      # ReLU in f32 (VPU, v5e-safe)
        if l + 1 < num_layers:
            h = h.astype(jnp.bfloat16)               # bf16 operand for next MXU layer
    rows, width = h.shape
    pooled = jnp.max(h.reshape(rows // ns, ns, width), axis=1)   # max over neighbors
    out_ref[...] = pooled.astype(out_ref.dtype)      # lane-dense bf16 store


# --------------------------- tiling / HW sizing ---------------------------- #

def _round_up(x, m):
    return ((x + m - 1) // m) * m


def _hw_params():
    """(mxu_lanes, vmem_budget, vmem_limit, target_rows) for the current TPU generation."""
    kind = ""
    try:
        kind = jax.devices()[0].device_kind.lower()
    except Exception:
        pass
    mxu_lanes = 128 if any(v in kind for v in ("v2", "v3", "v4", "v5")) else 256
    vmem_cap = 64 << 20                           # conservative default (v7x per-TC VMEM)
    try:
        vmem_cap = int(pltpu.get_tpu_info().vmem_capacity_bytes)
    except Exception:
        pass
    if ("v7" in kind) or ("7x" in kind) or vmem_cap < (100 << 20):
        # v7x-like: 64 MiB VMEM per TC, 2 TCs share the "parallel" grid axis.
        return mxu_lanes, 22 << 20, 32 << 20, 8192
    # v5e / v6e: 128 MiB physical VMEM, single TensorCore -> fewer, larger steps.
    return mxu_lanes, 56 << 20, 96 << 20, 16384


def _choose_tile_groups(m_groups, ns, g, cin, mlp_channels, vmem_budget, target_rows):
    """Pick tile_groups (multiple of 16) so the *padding-corrected* VMEM footprint fits."""
    cout = mlp_channels[-1]

    def lanes(c):
        return _round_up(c, 128)                  # VMEM arrays are 128-lane tiled

    # Resident params (constant index_map -> stay in VMEM; pipeliner double-buffers them).
    par = 0
    cprev = cin
    for c in mlp_channels:
        par += 2 * _round_up(g * cprev, 16) * lanes(g * c) * 2    # bf16 W'
        par += 2 * 8 * lanes(g * c) * 4                           # f32 b' (padded to 8 rows)
        cprev = c
    wmax = max(lanes(g * c) for c in mlp_channels)

    def vmem_bytes(tg):
        rows = tg * ns
        inp = 2 * _round_up(rows, 16) * lanes(g * cin) * 2        # bf16 input, double-buffered
        mid = _round_up(rows, 8) * wmax * 4 + _round_up(rows, 16) * wmax * 2  # f32 + bf16 live
        out = 2 * _round_up(tg, 16) * lanes(g * cout) * 2         # bf16 output, double-buffered
        return par + inp + mid + out

    # target_rows counts original per-point MLP rows; packed rows cover g*ns each.
    tg = max(16, _round_up(pl.cdiv(target_rows, g * ns), 16))
    while tg > 16 and vmem_bytes(tg) > vmem_budget:
        tg -= 16
    return tg


def mlp_max_pool(new_points, layer_params):
    """new_points: [M, nsample, C_in] bf16 -> [M, C_out] bf16 via a packed Pallas kernel."""
    M, ns, cin = new_points.shape
    mlp_channels = [w.shape[1] for (w, _) in layer_params]
    cout = mlp_channels[-1]
    num_layers = len(layer_params)

    mxu_lanes, vmem_budget, vmem_limit, target_rows = _hw_params()
    g = max(1, mxu_lanes // cout)                 # centers packed per lane tile (4 / 8)

    m_groups = pl.cdiv(M, g)
    tg = _choose_tile_groups(m_groups, ns, g, cin, mlp_channels, vmem_budget, target_rows)
    tg = min(tg, _round_up(m_groups, 16))
    # Keep >= 4 grid steps when the problem is large enough (keeps both v7x TCs busy).
    if m_groups >= 4 * 16:
        tg = min(tg, max(16, _round_up(pl.cdiv(m_groups, 4), 16)))

    m_groups_pad = _round_up(m_groups, tg)
    steps = m_groups_pad // tg
    if steps > 1 and steps % 2 == 1:
        m_groups_pad += tg                        # even step count -> balanced megacore split
        steps += 1

    m_pad = m_groups_pad * g
    if m_pad != M:
        # Zero-padding stays finite through the MLP; extra rows sliced off below.
        new_points = jnp.pad(new_points, ((0, m_pad - M), (0, 0), (0, 0)))

    # Pack G centers per lane tile: row = (group, neighbor), cols = G centers' channels
    # side by side -> all MXU operands and the output become lane-dense.
    packed = new_points.reshape(m_groups_pad, g, ns, cin).transpose(0, 2, 1, 3)
    packed = packed.reshape(m_groups_pad * ns, g * cin)

    # Block-diagonal folded weights / tiled biases (constant-folded under jit).
    flat_params = []
    in_specs = [pl.BlockSpec((tg * ns, g * cin), lambda i: (i, 0))]
    for (w, b) in layer_params:
        w_blk = jnp.kron(jnp.eye(g, dtype=w.dtype), w)            # (G*C_prev, G*C_l) bf16
        b_blk = jnp.tile(b, (1, g))                               # (1, G*C_l) f32
        for p in (w_blk, b_blk):
            flat_params.append(p)
            # constant index_map -> params stay resident in VMEM across the whole grid
            in_specs.append(pl.BlockSpec(p.shape, lambda i: (0, 0)))

    out_spec = pl.BlockSpec((tg, g * cout), lambda i: (i, 0))     # lane-dense output block

    out = pl.pallas_call(
        functools.partial(_mlp_max_kernel, num_layers, ns),
        out_shape=jax.ShapeDtypeStruct((m_groups_pad, g * cout), jnp.bfloat16),
        grid_spec=pltpu.PrefetchScalarGridSpec(
            num_scalar_prefetch=0,
            grid=(m_groups_pad // tg,),
            in_specs=in_specs,
            out_specs=out_spec,
        ),
        compiler_params=pltpu.CompilerParams(
            dimension_semantics=("parallel",),
            vmem_limit_bytes=vmem_limit,
        ),
    )(packed, *flat_params)

    # Unpack lanes back to centers: (groups, G*C_out) -> (groups*G, C_out)
    return out.reshape(m_groups_pad * g, cout)[:M]


# ------------------------ sampling / grouping glue ------------------------ #
# TODO(synk): FPS's sequential argmax loop and the kNN gather stay in plain JAX; a
# blocked/Pallas FPS would be needed to move end-to-end time at realistic N.

def square_distance(a, b):
    # ||a - b||^2 via ||a||^2 + ||b||^2 - 2 a.b^T (MXU matmul, no [B,S,N,3] broadcast)
    a2 = jnp.sum(a * a, axis=-1, keepdims=True)                 # [B, S, 1]
    b2 = jnp.sum(b * b, axis=-1)[:, None, :]                    # [B, 1, N]
    ab = jnp.einsum('bsc,bnc->bsn', a, b)                       # [B, S, N]
    return a2 + b2 - 2.0 * ab


def farthest_point_sample(xyz, npoint):
    # Deterministic FPS (PyTorch reference starts from randint; we start at index 0).
    B, N, _ = xyz.shape

    def body(i, state):
        dist, farthest, centroids = state
        centroids = centroids.at[:, i].set(farthest)
        centroid = jnp.take_along_axis(xyz, farthest[:, None, None], axis=1)   # [B,1,3]
        d = jnp.sum((xyz - centroid) ** 2, axis=-1)                            # [B,N]
        dist = jnp.minimum(dist, d)
        farthest = jnp.argmax(dist, axis=-1).astype(jnp.int32)
        return dist, farthest, centroids

    init = (jnp.full((B, N), 1e10, dtype=xyz.dtype),
            jnp.zeros((B,), dtype=jnp.int32),
            jnp.zeros((B, npoint), dtype=jnp.int32))
    _, _, centroids = jax.lax.fori_loop(0, npoint, body, init)
    return centroids


def index_points(points, idx):
    # points [B, N, C], idx [B, ...] -> [B, ..., C]
    B = points.shape[0]
    b_idx = jnp.arange(B).reshape((B,) + (1,) * (idx.ndim - 1))
    return points[b_idx, idx]


def sample_and_group_knn(npoint, nsample, xyz, points):
    fps_idx = farthest_point_sample(xyz, npoint)                 # [B, S]
    new_xyz = index_points(xyz, fps_idx)                         # [B, S, 3]
    dists = square_distance(new_xyz, xyz)                        # [B, S, N]
    _, idx = jax.lax.top_k(-dists, nsample)                      # k nearest, [B, S, K]
    grouped_xyz = index_points(xyz, idx)                         # [B, S, K, 3]
    # gather + center-subtract + concat + bf16 cast fused (no f32 [B,S,K,3+D] slab)
    grouped_xyz_norm = (grouped_xyz - new_xyz[:, :, None, :]).astype(jnp.bfloat16)
    grouped_points = index_points(points, idx).astype(jnp.bfloat16)   # [B, S, K, D]
    new_points = jnp.concatenate([grouped_xyz_norm, grouped_points], axis=-1)
    return new_xyz, new_points                                   # [B,S,3] f32, [B,S,K,3+D] bf16


# ------------------------------ module glue ------------------------------- #

def init_transition_down_params(key, channels):
    """channels = [C_in, C_1, ..., C_L]. Returns per-layer (W', b') with conv bias
    and eval-mode BatchNorm folded in: W' = W*scale, b' = b*scale + shift."""
    eps = 1e-5
    layer_params = []
    last = channels[0]
    for c_out in channels[1:]:
        key, k1, k2, k3, k4 = jax.random.split(key, 5)
        w = jax.random.normal(k1, (last, c_out), jnp.float32) * 0.1   # Conv2d 1x1 weight^T
        b = jax.random.normal(k2, (1, c_out), jnp.float32) * 0.05     # Conv2d bias
        gamma = 1.0 + 0.1 * jax.random.normal(k3, (1, c_out), jnp.float32)
        beta = 0.05 * jax.random.normal(k4, (1, c_out), jnp.float32)
        running_mean = jnp.zeros((1, c_out), jnp.float32)
        running_var = jnp.ones((1, c_out), jnp.float32)
        scale = gamma / jnp.sqrt(running_var + eps)                   # folded BN (eval)
        shift = beta - running_mean * scale
        w_fold = (w * scale).astype(jnp.bfloat16)                     # BN scale into columns
        b_fold = (b * scale + shift).astype(jnp.float32)              # bias + BN shift
        layer_params.append((w_fold, b_fold))
        last = c_out
    return layer_params


def transition_down(xyz, points, layer_params, npoint, nsample):
    new_xyz, new_points = sample_and_group_knn(npoint, nsample, xyz, points)
    B, S, K, C = new_points.shape
    feats = mlp_max_pool(new_points.reshape(B * S, K, C), layer_params)   # bf16 out
    return new_xyz, feats.reshape(B, S, -1)


def _reference_mlp_max(new_points_bf16, layer_params):
    """Pure-JAX reference for the Pallas hot path (same bf16/f32 dataflow, unpacked)."""
    M, ns, cin = new_points_bf16.shape
    h = new_points_bf16.reshape(M * ns, cin)
    n_layers = len(layer_params)
    for l, (w, b) in enumerate(layer_params):
        h = jnp.maximum(jnp.dot(h, w, preferred_element_type=jnp.float32) + b, 0.0)
        if l + 1 < n_layers:
            h = h.astype(jnp.bfloat16)
    return jnp.max(h.reshape(M, ns, -1), axis=1).astype(jnp.bfloat16)


# ---------------------------------- main ----------------------------------- #

if __name__ == "__main__":
    B, N, D = 2, 16, 4          # batch, points, input feature dim
    npoint, nneighbor = 8, 8    # TransitionDown(k, nneighbor, channels)
    channels = [D + 3, 32, 32]  # channels[0] = D + 3 (xyz offset concat), two MLP layers

    key = jax.random.PRNGKey(0)
    kx, kp, kw = jax.random.split(key, 3)
    xyz = jax.random.normal(kx, (B, N, 3), jnp.float32)
    points = jax.random.normal(kp, (B, N, D), jnp.float32)

    layer_params = init_transition_down_params(kw, channels)

    fwd = jax.jit(lambda x, p: transition_down(x, p, layer_params, npoint, nneighbor))
    new_xyz, new_feats = fwd(xyz, points)
    jax.block_until_ready((new_xyz, new_feats))

    # correctness check of the Pallas hot path vs pure JAX (identical bf16/f32 flow)
    _, grouped = sample_and_group_knn(npoint, nneighbor, xyz, points)
    ref = _reference_mlp_max(
        grouped.reshape(B * npoint, nneighbor, channels[0]),
        layer_params).reshape(B, npoint, -1)
    assert new_xyz.shape == (B, npoint, 3)
    assert new_feats.shape == (B, npoint, channels[-1])
    assert jnp.allclose(new_feats.astype(jnp.float32), ref.astype(jnp.float32),
                        atol=1e-2, rtol=1e-2), "mismatch vs reference"

    print("KERNEL_OK")
</pallas_src>

<mosaic_0001>
module attributes {stable_mosaic.version = 11 : i64} {
  func.func @_mlp_max_kernel(%arg0: i32, %arg1: memref<128x56xbf16, #tpu.memory_space<vmem>>, %arg2: memref<56x256xbf16, #tpu.memory_space<vmem>>, %arg3: memref<1x256xf32, #tpu.memory_space<vmem>>, %arg4: memref<256x256xbf16, #tpu.memory_space<vmem>>, %arg5: memref<1x256xf32, #tpu.memory_space<vmem>>, %arg6: memref<16x256xbf16, #tpu.memory_space<vmem>>) attributes {dimension_semantics = [#tpu.dimension_semantics<parallel>], iteration_bounds = array<i64: 1>, scalar_prefetch = 0 : i64, scratch_operands = 0 : i64, tpu.core_type = #tpu.core_type<tc>, window_params = [{transform_indices = @transform_0, window_bounds = array<i64: 128, 56>}, {pipeline_mode = #tpu.pipeline_mode<synchronous>, transform_indices = @transform_1, window_bounds = array<i64: 56, 256>}, {pipeline_mode = #tpu.pipeline_mode<synchronous>, transform_indices = @transform_2, window_bounds = array<i64: 1, 256>}, {pipeline_mode = #tpu.pipeline_mode<synchronous>, transform_indices = @transform_3, window_bounds = array<i64: 256, 256>}, {pipeline_mode = #tpu.pipeline_mode<synchronous>, transform_indices = @transform_4, window_bounds = array<i64: 1, 256>}, {transform_indices = @transform_5, window_bounds = array<i64: 16, 256>}]} {
    %c0 = arith.constant 0 : index
    %c0_0 = arith.constant 0 : index
    %0 = vector.load %arg1[%c0, %c0_0] : memref<128x56xbf16, #tpu.memory_space<vmem>>, vector<128x56xbf16>
    %c0_1 = arith.constant 0 : index
    %c0_2 = arith.constant 0 : index
    %1 = vector.load %arg2[%c0_1, %c0_2] : memref<56x256xbf16, #tpu.memory_space<vmem>>, vector<56x256xbf16>
    %c0_3 = arith.constant 0 : index
    %c0_4 = arith.constant 0 : index
    %2 = vector.load %arg3[%c0_3, %c0_4] : memref<1x256xf32, #tpu.memory_space<vmem>>, vector<1x256xf32>
    %cst = arith.constant dense<0.000000e+00> : vector<128x256xf32>
    %3 = tpu.matmul %0, %1, %cst {dimension_numbers = #tpu.dot_dimension_numbers<[1], [0], [0], [1], [0, 0, 1, 1], [], []>} : vector<128x56xbf16>, vector<56x256xbf16>, vector<128x256xf32> -> vector<128x256xf32>
    %4 = vector.broadcast %2 : vector<1x256xf32> to vector<128x256xf32>
    %5 = arith.addf %3, %4 : vector<128x256xf32>
    %cst_5 = arith.constant 0.000000e+00 : f32
    %6 = vector.broadcast %cst_5 : f32 to vector<128x256xf32>
    %7 = arith.maximumf %5, %6 : vector<128x256xf32>
    %8 = arith.truncf %7 : vector<128x256xf32> to vector<128x256xbf16>
    %c0_6 = arith.constant 0 : index
    %c0_7 = arith.constant 0 : index
    %9 = vector.load %arg4[%c0_6, %c0_7] : memref<256x256xbf16, #tpu.memory_space<vmem>>, vector<256x256xbf16>
    %c0_8 = arith.constant 0 : index
    %c0_9 = arith.constant 0 : index
    %10 = vector.load %arg5[%c0_8, %c0_9] : memref<1x256xf32, #tpu.memory_space<vmem>>, vector<1x256xf32>
    %cst_10 = arith.constant dense<0.000000e+00> : vector<128x256xf32>
    %11 = tpu.matmul %8, %9, %cst_10 {dimension_numbers = #tpu.dot_dimension_numbers<[1], [0], [0], [1], [0, 0, 1, 1], [], []>} : vector<128x256xbf16>, vector<256x256xbf16>, vector<128x256xf32> -> vector<128x256xf32>
    %12 = vector.broadcast %10 : vector<1x256xf32> to vector<128x256xf32>
    %13 = arith.addf %11, %12 : vector<128x256xf32>
    %cst_11 = arith.constant 0.000000e+00 : f32
    %14 = vector.broadcast %cst_11 : f32 to vector<128x256xf32>
    %15 = arith.maximumf %13, %14 : vector<128x256xf32>
    %16 = vector.shape_cast %15 : vector<128x256xf32> to vector<16x8x256xf32>
    %cst_12 = arith.constant dense<0xFF800000> : vector<16x256xf32>
    %17 = vector.multi_reduction <maximumf>, %16, %cst_12 [1] : vector<16x8x256xf32> to vector<16x256xf32>
    %18 = arith.truncf %17 : vector<16x256xf32> to vector<16x256xbf16>
    %c0_13 = arith.constant 0 : index
    %c0_14 = arith.constant 0 : index
    %19 = vector.load %arg6[%c0_13, %c0_14] : memref<16x256xbf16, #tpu.memory_space<vmem>>, vector<16x256xbf16>
    tpu.vector_store %arg6[%c0_13, %c0_14], %18 {strides = array<i32>} : memref<16x256xbf16, #tpu.memory_space<vmem>>, vector<16x256xbf16>,
    return
  }
  func.func @transform_0(%arg0: i32) -> (i32, i32) {
    %c0_i32 = arith.constant 0 : i32
    %c0_i32_0 = arith.constant 0 : i32
    return %arg0, %c0_i32 : i32, i32
  }
  func.func @transform_1(%arg0: i32) -> (i32, i32) {
    %c0_i32 = arith.constant 0 : i32
    %c0_i32_0 = arith.constant 0 : i32
    %c0_i32_1 = arith.constant 0 : i32
    return %c0_i32, %c0_i32_0 : i32, i32
  }
  func.func @transform_2(%arg0: i32) -> (i32, i32) {
    %c0_i32 = arith.constant 0 : i32
    %c0_i32_0 = arith.constant 0 : i32
    %c0_i32_1 = arith.constant 0 : i32
    return %c0_i32, %c0_i32_0 : i32, i32
  }
  func.func @transform_3(%arg0: i32) -> (i32, i32) {
    %c0_i32 = arith.constant 0 : i32
    %c0_i32_0 = arith.constant 0 : i32
    %c0_i32_1 = arith.constant 0 : i32
    return %c0_i32, %c0_i32_0 : i32, i32
  }
  func.func @transform_4(%arg0: i32) -> (i32, i32) {
    %c0_i32 = arith.constant 0 : i32
    %c0_i32_0 = arith.constant 0 : i32
    %c0_i32_1 = arith.constant 0 : i32
    return %c0_i32, %c0_i32_0 : i32, i32
  }
  func.func @transform_5(%arg0: i32) -> (i32, i32) {
    %c0_i32 = arith.constant 0 : i32
    %c0_i32_0 = arith.constant 0 : i32
    return %arg0, %c0_i32 : i32, i32
  }
}

</mosaic_0001>

<llo_original>
// kernel: custom-call.8
$region0: #{custom-call.8}
  %s0 = inlined_call_operand.vmem [shape: f32[2,16], index: 0, kind: output, shape index: {}]

// kernel: _lambda_.1
$region0: #{_lambda_.1}
  #allocation0 [shape = 'u32[]', space=smem, size = 0x4, offset = 0x4, fixed_abs, tag = 'smem constant byte address 0x4 - core index']
  #allocation1 [shape = 'u32[144,128]{1,0:T(1,128)}', space=vmem, size = 0x12000, scoped, tag = 'internal scratch']
  %s0 = inlined_call_operand.vmem [shape: bf16[128,56], index: 0, kind: input, shape index: {}]
  %s1 = inlined_call_operand.vmem [shape: bf16[56,256], index: 1, kind: input, shape index: {}]
  %s2 = inlined_call_operand.vmem [shape: f32[1,256], index: 2, kind: input, shape index: {}]
  %s3 = inlined_call_operand.vmem [shape: bf16[256,256], index: 3, kind: input, shape index: {}]
  %s4 = inlined_call_operand.vmem [shape: f32[1,256], index: 4, kind: input, shape index: {}]
  %s5 = inlined_call_operand.vmem [shape: bf16[16,256], index: 5, kind: output, shape index: {}]
  %s6 = sld [smem:[#allocation0]]
  $region30: #{_lambda_.1} parent=0
    _
  %s8 = ssub.s32 1, %s6
  %s9 = scalar_select 0, %s8, %s6
  // Predicated region
  $region2: #{_lambda_.1} parent=0 // pred_check
    _
  $region3: #{_lambda_.1} parent=0 // pred_check_branch
    %11 = sbr.rel (0) target = $region5
  $region4: #{_lambda_.1} parent=0 // pred_region
    _
  $region5: #{_lambda_.1} parent=0 // pred_fallthru
    _
  // Predicated region
  $region6: #{_lambda_.1} parent=0 // pred_check
    _
  $region7: #{_lambda_.1} parent=0 // pred_check_branch
    %13 = sbr.rel (0) target = $region9
  $region8: #{_lambda_.1} parent=0 // pred_region
    _
  $region9: #{_lambda_.1} parent=0 // pred_fallthru
    _
  // Predicated region
  $region10: #{_lambda_.1} parent=0 // pred_check
    _
  $region11: #{_lambda_.1} parent=0 // pred_check_branch
    %15 = sbr.rel (0) target = $region13
  $region12: #{_lambda_.1} parent=0 // pred_region
    _
  $region13: #{_lambda_.1} parent=0 // pred_fallthru
    _
  // Predicated region
  $region14: #{_lambda_.1} parent=0 // pred_check
    _
  $region15: #{_lambda_.1} parent=0 // pred_check_branch
    %17 = sbr.rel (0) target = $region17
  $region16: #{_lambda_.1} parent=0 // pred_region
    _
  $region17: #{_lambda_.1} parent=0 // pred_fallthru
    _
  // Predicated region
  $region18: #{_lambda_.1} parent=0 // pred_check
    _
  $region19: #{_lambda_.1} parent=0 // pred_check_branch
    %19 = sbr.rel (0) target = $region21
  $region20: #{_lambda_.1} parent=0 // pred_region
    _
  $region21: #{_lambda_.1} parent=0 // pred_fallthru
    _
  %v21 = vld [vmem:[%s0] sm:$0xf]
  %v22 = vld [vmem:[%s0 + $0x4] sm:$0xf]
  %v23 = vld [vmem:[%s0 + $0x8] sm:$0xf]
  %v24 = vld [vmem:[%s0 + $0xc] sm:$0xf]
  %v25 = vld [vmem:[%s0 + $0x10] sm:$0xf]
  %v26 = vld [vmem:[%s0 + $0x14] sm:$0xf]
  %v27 = vld [vmem:[%s0 + $0x18] sm:$0xf]
  %v28 = vld [vmem:[%s0 + $0x1c] sm:$0xf]
  %v29 = vld [vmem:[%s0 + $0x20] sm:$0xf]
  %v30 = vld [vmem:[%s0 + $0x24] sm:$0xf]
  %v31 = vld [vmem:[%s0 + $0x28] sm:$0xf]
  %v32 = vld [vmem:[%s0 + $0x2c] sm:$0xf]
  %v33 = vld [vmem:[%s0 + $0x30] sm:$0xf]
  %v34 = vld [vmem:[%s0 + $0x34] sm:$0xf]
  %v35 = vld [vmem:[%s0 + $0x38] sm:$0xf]
  %v36 = vld [vmem:[%s0 + $0x3c] sm:$0xf]
  %v37 = vld [vmem:[%s1] sm:$0xff]
  %v38 = vld [vmem:[%s1 + $0x8] sm:$0xff]
  %v39 = vld [vmem:[%s1 + $0x10] sm:$0xff]
  %v40 = vld [vmem:[%s1 + $0x18] sm:$0xff]
  %v41 = vld [vmem:[%s1 + $0x20] sm:$0xff]
  %v42 = vld [vmem:[%s1 + $0x28] sm:$0xff]
  %v43 = vld [vmem:[%s1 + $0x30] sm:$0xff]
  %v44 = vld [vmem:[%s2] sm:$0x3]
  %v46 = vlaneseq
  %v47 = vshrl.u32 %v46, 7
  %v48 = vsub.s32 0, %v47
  %v49 = vrot.slane %v44, %v48
  %v50 = vlaneseq
  %v51 = vshrl.u32 %v50, 7
  %v52 = vsub.s32 1, %v51
  %v53 = vrot.slane %v44, %v52
  %v72 = vunpack.c.l.b16 %v21
  %v73 = vunpack.c.l.b16 %v22
  %v74 = vunpack.c.l.b16 %v23
  %v75 = vunpack.c.l.b16 %v24
  %v76 = vunpack.c.l.b16 %v25
  %v77 = vunpack.c.l.b16 %v26
  %v78 = vunpack.c.l.b16 %v27
  %v79 = vunpack.c.l.b16 %v28
  %v80 = vunpack.c.l.b16 %v29
  %v81 = vunpack.c.l.b16 %v30
  %v82 = vunpack.c.l.b16 %v31
  %v83 = vunpack.c.l.b16 %v32
  %v84 = vunpack.c.l.b16 %v33
  %v85 = vunpack.c.l.b16 %v34
  %v86 = vunpack.c.l.b16 %v35
  %v87 = vunpack.c.l.b16 %v36
  %v88 = vpack.c.b16 %v73, %v72
  %v89 = vpack.c.b16 %v75, %v74
  %v90 = vpack.c.b16 %v77, %v76
  %v91 = vpack.c.b16 %v79, %v78
  %v92 = vpack.c.b16 %v81, %v80
  %v93 = vpack.c.b16 %v83, %v82
  %v94 = vpack.c.b16 %v85, %v84
  %v95 = vpack.c.b16 %v87, %v86
  %v103 = vunpack.c.l.b16 %v37
  %v104 = vunpack.c.h.b16 %v37
  %v105 = vunpack.c.l.b16 %v38
  %v106 = vunpack.c.h.b16 %v38
  %v107 = vunpack.c.l.b16 %v39
  %v108 = vunpack.c.h.b16 %v39
  %v109 = vunpack.c.l.b16 %v40
  %v110 = vunpack.c.h.b16 %v40
  %v111 = vunpack.c.l.b16 %v41
  %v112 = vunpack.c.h.b16 %v41
  %v113 = vunpack.c.l.b16 %v42
  %v114 = vunpack.c.h.b16 %v42
  %v115 = vunpack.c.l.b16 %v43
  %v116 = vunpack.c.h.b16 %v43
  %v117 = vpack.c.b16 %v105, %v103
  %v118 = vpack.c.b16 %v106, %v104
  %v119 = vpack.c.b16 %v109, %v107
  %v120 = vpack.c.b16 %v110, %v108
  %v121 = vpack.c.b16 %v113, %v111
  %v122 = vpack.c.b16 %v114, %v112
  %v123 = vpack.c.b16 %v115, %v115
  %v124 = vpack.c.b16 %v116, %v116
  %vm131 = vcmask 457728
  %v133 = vsel %vm131, %v88, 0
  %v136 = vsel %vm131, %v89, 0
  %v139 = vsel %vm131, %v90, 0
  %v142 = vsel %vm131, %v91, 0
  %v145 = vsel %vm131, %v92, 0
  %v148 = vsel %vm131, %v93, 0
  %v151 = vsel %vm131, %v94, 0
  %v154 = vsel %vm131, %v95, 0
  %vm156 = vcmask 1043456
  %v158 = vsel %vm156, %v123, 0
  %v161 = vsel %vm156, %v124, 0
  %163 = vmatprep.subr.bf16.mxu0 0
  %164 = vmatpush1.bf16.msra.mxu0 0
  %165 = vmatprep.subr.bf16.mxu0 0
  %166 = vmatpush1.bf16.msra.mxu0 0
  %167 = vmatprep.subr.bf16.mxu0 0
  %168 = vmatpush1.bf16.msra.mxu0 0
  %169 = vmatprep.subr.bf16.mxu0 0
  %170 = vmatpush1.bf16.msra.mxu0 0
  %171 = vmatprep.subr.bf16.mxu0 %v161
  %172 = vmatpush1.bf16.msra.mxu0 %v158
  %173 = vmatprep.subr.bf16.mxu0 %v122
  %174 = vmatpush1.bf16.msra.mxu0 %v121
  %175 = vmatprep.subr.bf16.mxu0 %v120
  %176 = vmatpush1.bf16.msra.mxu0 %v119
  %177 = vmatprep.subr.bf16.mxu0 %v118
  %178 = vmatpush1.bf16.msra.mxu0 %v117
  %179 = vmatprep.subr.bf16.mxu0 0
  %180 = vmatpush2.bf16.msra.mxu0 0
  %181 = vmatprep.subr.bf16.mxu0 0
  %182 = vmatpush2.bf16.msra.mxu0 0
  %183 = vmatprep.subr.bf16.mxu0 0
  %184 = vmatpush2.bf16.msra.mxu0 0
  %185 = vmatprep.subr.bf16.mxu0 0
  %186 = vmatpush2.bf16.msra.mxu0 0
  %187 = vmatprep.subr.bf16.mxu0 0
  %188 = vmatpush2.bf16.msra.mxu0 0
  %189 = vmatprep.subr.bf16.mxu0 0
  %190 = vmatpush2.bf16.msra.mxu0 0
  %191 = vmatprep.subr.bf16.mxu0 0
  %192 = vmatpush2.bf16.msra.mxu0 0
  %193 = vmatprep.subr.bf16.mxu0 0
  %194 = vmatpush2.bf16.msra.mxu0 0
  %195 = vmatprep.mubr.bf16.mxu0 0
  %196 = vmatmul.mubr.bf16.gmra.mxu0 %v133
  %v197 = vpop.f32.mrf.mxu0
  %v198 = vadd.f32 %v49, %v197
  %v199 = vpop.f32.mrf.mxu0
  %v200 = vadd.f32 %v53, %v199
  %v201 = vpop.f32.mrf.mxu0
  %v202 = vadd.f32 %v49, %v201
  %v203 = vpop.f32.mrf.mxu0
  %v204 = vadd.f32 %v53, %v203
  %205 = vmatprep.mubr.bf16.mxu0 0
  %206 = vmatmul.mubr.bf16.gmra.mxu0 %v136
  %v207 = vpop.f32.mrf.mxu0
  %v208 = vadd.f32 %v49, %v207
  %v209 = vpop.f32.mrf.mxu0
  %v210 = vadd.f32 %v53, %v209
  %v211 = vpop.f32.mrf.mxu0
  %v212 = vadd.f32 %v49, %v211
  %v213 = vpop.f32.mrf.mxu0
  %v214 = vadd.f32 %v53, %v213
  %215 = vmatprep.mubr.bf16.mxu0 0
  %216 = vmatmul.mubr.bf16.gmra.mxu0 %v139
  %v217 = vpop.f32.mrf.mxu0
  %v218 = vadd.f32 %v49, %v217
  %v219 = vpop.f32.mrf.mxu0
  %v220 = vadd.f32 %v53, %v219
  %v221 = vpop.f32.mrf.mxu0
  %v222 = vadd.f32 %v49, %v221
  %v223 = vpop.f32.mrf.mxu0
  %v224 = vadd.f32 %v53, %v223
  %225 = vmatprep.mubr.bf16.mxu0 0
  %226 = vmatmul.mubr.bf16.gmra.mxu0 %v142
  %v227 = vpop.f32.mrf.mxu0
  %v228 = vadd.f32 %v49, %v227
  %v229 = vpop.f32.mrf.mxu0
  %v230 = vadd.f32 %v53, %v229
  %v231 = vpop.f32.mrf.mxu0
  %v232 = vadd.f32 %v49, %v231
  %v233 = vpop.f32.mrf.mxu0
  %v234 = vadd.f32 %v53, %v233
  %235 = vmatprep.mubr.bf16.mxu0 0
  %236 = vmatmul.mubr.bf16.gmra.mxu0 %v145
  %v237 = vpop.f32.mrf.mxu0
  %v238 = vadd.f32 %v49, %v237
  %v239 = vpop.f32.mrf.mxu0
  %v240 = vadd.f32 %v53, %v239
  %v241 = vpop.f32.mrf.mxu0
  %v242 = vadd.f32 %v49, %v241
  %v243 = vpop.f32.mrf.mxu0
  %v244 = vadd.f32 %v53, %v243
  %245 = vmatprep.mubr.bf16.mxu0 0
  %246 = vmatmul.mubr.bf16.gmra.mxu0 %v148
  %v247 = vpop.f32.mrf.mxu0
  %v248 = vadd.f32 %v49, %v247
  %v249 = vpop.f32.mrf.mxu0
  %v250 = vadd.f32 %v53, %v249
  %v251 = vpop.f32.mrf.mxu0
  %v252 = vadd.f32 %v49, %v251
  %v253 = vpop.f32.mrf.mxu0
  %v254 = vadd.f32 %v53, %v253
  %255 = vmatprep.mubr.bf16.mxu0 0
  %256 = vmatmul.mubr.bf16.gmra.mxu0 %v151
  %v257 = vpop.f32.mrf.mxu0
  %v258 = vadd.f32 %v49, %v257
  %v259 = vpop.f32.mrf.mxu0
  %v260 = vadd.f32 %v53, %v259
  %v261 = vpop.f32.mrf.mxu0
  %v262 = vadd.f32 %v49, %v261
  %v263 = vpop.f32.mrf.mxu0
  %v264 = vadd.f32 %v53, %v263
  %265 = vmatprep.mubr.bf16.mxu0 0
  %266 = vmatmul.mubr.bf16.gmra.mxu0 %v154
  %v267 = vpop.f32.mrf.mxu0
  %v268 = vadd.f32 %v49, %v267
  %v269 = vpop.f32.mrf.mxu0
  %v270 = vadd.f32 %v53, %v269
  %v271 = vpop.f32.mrf.mxu0
  %v272 = vadd.f32 %v49, %v271
  %v273 = vpop.f32.mrf.mxu0
  %v274 = vadd.f32 %v53, %v273
  %275 = vdwg.mxu0
  %v276 = vmax.f32 %v198, 0.0
  %v277 = vmax.f32 %v200, 0.0
  %v278 = vmax.f32 %v202, 0.0
  %v279 = vmax.f32 %v204, 0.0
  %v280 = vmax.f32 %v208, 0.0
  %v281 = vmax.f32 %v210, 0.0
  %v282 = vmax.f32 %v212, 0.0
  %v283 = vmax.f32 %v214, 0.0
  %v284 = vmax.f32 %v218, 0.0
  %v285 = vmax.f32 %v220, 0.0
  %v286 = vmax.f32 %v222, 0.0
  %v287 = vmax.f32 %v224, 0.0
  %v288 = vmax.f32 %v228, 0.0
  %v289 = vmax.f32 %v230, 0.0
  %v290 = vmax.f32 %v232, 0.0
  %v291 = vmax.f32 %v234, 0.0
  %v292 = vmax.f32 %v238, 0.0
  %v293 = vmax.f32 %v240, 0.0
  %v294 = vmax.f32 %v242, 0.0
  %v295 = vmax.f32 %v244, 0.0
  %v296 = vmax.f32 %v248, 0.0
  %v297 = vmax.f32 %v250, 0.0
  %v298 = vmax.f32 %v252, 0.0
  %v299 = vmax.f32 %v254, 0.0
  %v300 = vmax.f32 %v258, 0.0
  %v301 = vmax.f32 %v260, 0.0
  %v302 = vmax.f32 %v262, 0.0
  %v303 = vmax.f32 %v264, 0.0
  %v304 = vmax.f32 %v268, 0.0
  %v305 = vmax.f32 %v270, 0.0
  %v306 = vmax.f32 %v272, 0.0
  %v307 = vmax.f32 %v274, 0.0
  %v308 = vpack.c.bf16 %v278, %v276
  %v309 = vpack.c.bf16 %v279, %v277
  %v310 = vpack.c.bf16 %v282, %v280
  %v311 = vpack.c.bf16 %v283, %v281
  %v312 = vpack.c.bf16 %v286, %v284
  %v313 = vpack.c.bf16 %v287, %v285
  %v314 = vpack.c.bf16 %v290, %v288
  %v315 = vpack.c.bf16 %v291, %v289
  %v316 = vpack.c.bf16 %v294, %v292
  %v317 = vpack.c.bf16 %v295, %v293
  %v318 = vpack.c.bf16 %v298, %v296
  %v319 = vpack.c.bf16 %v299, %v297
  %v320 = vpack.c.bf16 %v302, %v300
  %v321 = vpack.c.bf16 %v303, %v301
  %v322 = vpack.c.bf16 %v306, %v304
  %v323 = vpack.c.bf16 %v307, %v305
  %v324 = vld [vmem:[%s3] sm:$0xff]
  %v325 = vld [vmem:[%s3 + $0x8] sm:$0xff]
  %v326 = vld [vmem:[%s3 + $0x10] sm:$0xff]
  %v327 = vld [vmem:[%s3 + $0x18] sm:$0xff]
  %v328 = vld [vmem:[%s3 + $0x20] sm:$0xff]
  %v329 = vld [vmem:[%s3 + $0x28] sm:$0xff]
  %v330 = vld [vmem:[%s3 + $0x30] sm:$0xff]
  %v331 = vld [vmem:[%s3 + $0x38] sm:$0xff]
  %v332 = vld [vmem:[%s3 + $0x40] sm:$0xff]
  %v333 = vld [vmem:[%s3 + $0x48] sm:$0xff]
  %v334 = vld [vmem:[%s3 + $0x50] sm:$0xff]
  %v335 = vld [vmem:[%s3 + $0x58] sm:$0xff]
  %v336 = vld [vmem:[%s3 + $0x60] sm:$0xff]
  %v337 = vld [vmem:[%s3 + $0x68] sm:$0xff]
  %v338 = vld [vmem:[%s3 + $0x70] sm:$0xff]
  %v339 = vld [vmem:[%s3 + $0x78] sm:$0xff]
  %v340 = vld [vmem:[%s3 + $0x80] sm:$0xff]
  %v341 = vld [vmem:[%s3 + $0x88] sm:$0xff]
  %v342 = vld [vmem:[%s3 + $0x90] sm:$0xff]
  %v343 = vld [vmem:[%s3 + $0x98] sm:$0xff]
  %v344 = vld [vmem:[%s3 + $0xa0] sm:$0xff]
  %v345 = vld [vmem:[%s3 + $0xa8] sm:$0xff]
  %v346 = vld [vmem:[%s3 + $0xb0] sm:$0xff]
  %v347 = vld [vmem:[%s3 + $0xb8] sm:$0xff]
  %v348 = vld [vmem:[%s3 + $0xc0] sm:$0xff]
  %v349 = vld [vmem:[%s3 + $0xc8] sm:$0xff]
  %v350 = vld [vmem:[%s3 + $0xd0] sm:$0xff]
  %v351 = vld [vmem:[%s3 + $0xd8] sm:$0xff]
  %v352 = vld [vmem:[%s3 + $0xe0] sm:$0xff]
  %v353 = vld [vmem:[%s3 + $0xe8] sm:$0xff]
  %v354 = vld [vmem:[%s3 + $0xf0] sm:$0xff]
  %v355 = vld [vmem:[%s3 + $0xf8] sm:$0xff]
  %v356 = vld [vmem:[%s4] sm:$0x3]
  %v358 = vlaneseq
  %v359 = vshrl.u32 %v358, 7
  %v360 = vsub.s32 0, %v359
  %v361 = vrot.slane %v356, %v360
  %v362 = vlaneseq
  %v363 = vshrl.u32 %v362, 7
  %v364 = vsub.s32 1, %v363
  %v365 = vrot.slane %v356, %v364
  %v400 = vunpack.c.l.b16 %v324
  %v401 = vunpack.c.h.b16 %v324
  %v402 = vunpack.c.l.b16 %v325
  %v403 = vunpack.c.h.b16 %v325
  %v404 = vunpack.c.l.b16 %v326
  %v405 = vunpack.c.h.b16 %v326
  %v406 = vunpack.c.l.b16 %v327
  %v407 = vunpack.c.h.b16 %v327
  %v408 = vunpack.c.l.b16 %v328
  %v409 = vunpack.c.h.b16 %v328
  %v410 = vunpack.c.l.b16 %v329
  %v411 = vunpack.c.h.b16 %v329
  %v412 = vunpack.c.l.b16 %v330
  %v413 = vunpack.c.h.b16 %v330
  %v414 = vunpack.c.l.b16 %v331
  %v415 = vunpack.c.h.b16 %v331
  %v416 = vunpack.c.l.b16 %v332
  %v417 = vunpack.c.h.b16 %v332
  %v418 = vunpack.c.l.b16 %v333
  %v419 = vunpack.c.h.b16 %v333
  %v420 = vunpack.c.l.b16 %v334
  %v421 = vunpack.c.h.b16 %v334
  %v422 = vunpack.c.l.b16 %v335
  %v423 = vunpack.c.h.b16 %v335
  %v424 = vunpack.c.l.b16 %v336
  %v425 = vunpack.c.h.b16 %v336
  %v426 = vunpack.c.l.b16 %v337
  %v427 = vunpack.c.h.b16 %v337
  %v428 = vunpack.c.l.b16 %v338
  %v429 = vunpack.c.h.b16 %v338
  %v430 = vunpack.c.l.b16 %v339
  %v431 = vunpack.c.h.b16 %v339
  %v432 = vunpack.c.l.b16 %v340
  %v433 = vunpack.c.h.b16 %v340
  %v434 = vunpack.c.l.b16 %v341
  %v435 = vunpack.c.h.b16 %v341
  %v436 = vunpack.c.l.b16 %v342
  %v437 = vunpack.c.h.b16 %v342
  %v438 = vunpack.c.l.b16 %v343
  %v439 = vunpack.c.h.b16 %v343
  %v440 = vunpack.c.l.b16 %v344
  %v441 = vunpack.c.h.b16 %v344
  %v442 = vunpack.c.l.b16 %v345
  %v443 = vunpack.c.h.b16 %v345
  %v444 = vunpack.c.l.b16 %v346
  %v445 = vunpack.c.h.b16 %v346
  %v446 = vunpack.c.l.b16 %v347
  %v447 = vunpack.c.h.b16 %v347
  %v448 = vunpack.c.l.b16 %v348
  %v449 = vunpack.c.h.b16 %v348
  %v450 = vunpack.c.l.b16 %v349
  %v451 = vunpack.c.h.b16 %v349
  %v452 = vunpack.c.l.b16 %v350
  %v453 = vunpack.c.h.b16 %v350
  %v454 = vunpack.c.l.b16 %v351
  %v455 = vunpack.c.h.b16 %v351
  %v456 = vunpack.c.l.b16 %v352
  %v457 = vunpack.c.h.b16 %v352
  %v458 = vunpack.c.l.b16 %v353
  %v459 = vunpack.c.h.b16 %v353
  %v460 = vunpack.c.l.b16 %v354
  %v461 = vunpack.c.h.b16 %v354
  %v462 = vunpack.c.l.b16 %v355
  %v463 = vunpack.c.h.b16 %v355
  %v464 = vpack.c.b16 %v402, %v400
  %v465 = vpack.c.b16 %v403, %v401
  %v466 = vpack.c.b16 %v406, %v404
  %v467 = vpack.c.b16 %v407, %v405
  %v468 = vpack.c.b16 %v410, %v408
  %v469 = vpack.c.b16 %v411, %v409
  %v470 = vpack.c.b16 %v414, %v412
  %v471 = vpack.c.b16 %v415, %v413
  %v472 = vpack.c.b16 %v418, %v416
  %v473 = vpack.c.b16 %v419, %v417
  %v474 = vpack.c.b16 %v422, %v420
  %v475 = vpack.c.b16 %v423, %v421
  %v476 = vpack.c.b16 %v426, %v424
  %v477 = vpack.c.b16 %v427, %v425
  %v478 = vpack.c.b16 %v430, %v428
  %v479 = vpack.c.b16 %v431, %v429
  %v480 = vpack.c.b16 %v434, %v432
  %v481 = vpack.c.b16 %v435, %v433
  %v482 = vpack.c.b16 %v438, %v436
  %v483 = vpack.c.b16 %v439, %v437
  %v484 = vpack.c.b16 %v442, %v440
  %v485 = vpack.c.b16 %v443, %v441
  %v486 = vpack.c.b16 %v446, %v444
  %v487 = vpack.c.b16 %v447, %v445
  %v488 = vpack.c.b16 %v450, %v448
  %v489 = vpack.c.b16 %v451, %v449
  %v490 = vpack.c.b16 %v454, %v452
  %v491 = vpack.c.b16 %v455, %v453
  %v492 = vpack.c.b16 %v458, %v456
  %v493 = vpack.c.b16 %v459, %v457
  %v494 = vpack.c.b16 %v462, %v460
  %v495 = vpack.c.b16 %v463, %v461
  %528 = vmatprep.subr.bf16.mxu0 %v479
  %529 = vmatpush1.bf16.msra.mxu0 %v478
  %530 = vmatprep.subr.bf16.mxu0 %v477
  %531 = vmatpush1.bf16.msra.mxu0 %v476
  %532 = vmatprep.subr.bf16.mxu0 %v475
  %533 = vmatpush1.bf16.msra.mxu0 %v474
  %534 = vmatprep.subr.bf16.mxu0 %v473
  %535 = vmatpush1.bf16.msra.mxu0 %v472
  %536 = vmatprep.subr.bf16.mxu0 %v471
  %537 = vmatpush1.bf16.msra.mxu0 %v470
  %538 = vmatprep.subr.bf16.mxu0 %v469
  %539 = vmatpush1.bf16.msra.mxu0 %v468
  %540 = vmatprep.subr.bf16.mxu0 %v467
  %541 = vmatpush1.bf16.msra.mxu0 %v466
  %542 = vmatprep.subr.bf16.mxu0 %v465
  %543 = vmatpush1.bf16.msra.mxu0 %v464
  %544 = vmatprep.subr.bf16.mxu0 %v495
  %545 = vmatpush2.bf16.msra.mxu0 %v494
  %546 = vmatprep.subr.bf16.mxu0 %v493
  %547 = vmatpush2.bf16.msra.mxu0 %v492
  %548 = vmatprep.subr.bf16.mxu0 %v491
  %549 = vmatpush2.bf16.msra.mxu0 %v490
  %550 = vmatprep.subr.bf16.mxu0 %v489
  %551 = vmatpush2.bf16.msra.mxu0 %v488
  %552 = vmatprep.subr.bf16.mxu0 %v487
  %553 = vmatpush2.bf16.msra.mxu0 %v486
  %554 = vmatprep.subr.bf16.mxu0 %v485
  %555 = vmatpush2.bf16.msra.mxu0 %v484
  %556 = vmatprep.subr.bf16.mxu0 %v483
  %557 = vmatpush2.bf16.msra.mxu0 %v482
  %558 = vmatprep.subr.bf16.mxu0 %v481
  %559 = vmatpush2.bf16.msra.mxu0 %v480
  %560 = vmatprep.mubr.bf16.mxu0 %v309
  %561 = vmatmul.mubr.bf16.gmra.mxu0 %v308
  %v562 = vpop.f32.mrf.mxu0
  %v563 = vadd.f32 %v361, %v562
  %v564 = vpop.f32.mrf.mxu0
  %v565 = vadd.f32 %v365, %v564
  %v566 = vpop.f32.mrf.mxu0
  %v567 = vadd.f32 %v361, %v566
  %v568 = vpop.f32.mrf.mxu0
  %v569 = vadd.f32 %v365, %v568
  %570 = vmatprep.mubr.bf16.mxu0 %v311
  %571 = vmatmul.mubr.bf16.gmra.mxu0 %v310
  %v572 = vpop.f32.mrf.mxu0
  %v573 = vadd.f32 %v361, %v572
  %v574 = vpop.f32.mrf.mxu0
  %v575 = vadd.f32 %v365, %v574
  %v576 = vpop.f32.mrf.mxu0
  %v577 = vadd.f32 %v361, %v576
  %v578 = vpop.f32.mrf.mxu0
  %v579 = vadd.f32 %v365, %v578
  %580 = vmatprep.mubr.bf16.mxu0 %v313
  %581 = vmatmul.mubr.bf16.gmra.mxu0 %v312
  %v582 = vpop.f32.mrf.mxu0
  %v583 = vadd.f32 %v361, %v582
  %v584 = vpop.f32.mrf.mxu0
  %v585 = vadd.f32 %v365, %v584
  %v586 = vpop.f32.mrf.mxu0
  %v587 = vadd.f32 %v361, %v586
  %v588 = vpop.f32.mrf.mxu0
  %v589 = vadd.f32 %v365, %v588
  %590 = vmatprep.mubr.bf16.mxu0 %v315
  %591 = vmatmul.mubr.bf16.gmra.mxu0 %v314
  %v592 = vpop.f32.mrf.mxu0
  %v593 = vadd.f32 %v361, %v592
  %v594 = vpop.f32.mrf.mxu0
  %v595 = vadd.f32 %v365, %v594
  %v596 = vpop.f32.mrf.mxu0
  %v597 = vadd.f32 %v361, %v596
  %v598 = vpop.f32.mrf.mxu0
  %v599 = vadd.f32 %v365, %v598
  %600 = vmatprep.mubr.bf16.mxu0 %v317
  %601 = vmatmul.mubr.bf16.gmra.mxu0 %v316
  %v602 = vpop.f32.mrf.mxu0
  %v603 = vadd.f32 %v361, %v602
  %v604 = vpop.f32.mrf.mxu0
  %v605 = vadd.f32 %v365, %v604
  %v606 = vpop.f32.mrf.mxu0
  %v607 = vadd.f32 %v361, %v606
  %v608 = vpop.f32.mrf.mxu0
  %v609 = vadd.f32 %v365, %v608
  %610 = vmatprep.mubr.bf16.mxu0 %v319
  %611 = vmatmul.mubr.bf16.gmra.mxu0 %v318
  %v612 = vpop.f32.mrf.mxu0
  %v613 = vadd.f32 %v361, %v612
  %v614 = vpop.f32.mrf.mxu0
  %v615 = vadd.f32 %v365, %v614
  %v616 = vpop.f32.mrf.mxu0
  %v617 = vadd.f32 %v361, %v616
  %v618 = vpop.f32.mrf.mxu0
  %v619 = vadd.f32 %v365, %v618
  %620 = vmatprep.mubr.bf16.mxu0 %v321
  %621 = vmatmul.mubr.bf16.gmra.mxu0 %v320
  %v622 = vpop.f32.mrf.mxu0
  %v623 = vadd.f32 %v361, %v622
  %v624 = vpop.f32.mrf.mxu0
  %v625 = vadd.f32 %v365, %v624
  %v626 = vpop.f32.mrf.mxu0
  %v627 = vadd.f32 %v361, %v626
  %v628 = vpop.f32.mrf.mxu0
  %v629 = vadd.f32 %v365, %v628
  %630 = vmatprep.mubr.bf16.mxu0 %v323
  %631 = vmatmul.mubr.bf16.gmra.mxu0 %v322
  %v632 = vpop.f32.mrf.mxu0
  %v633 = vadd.f32 %v361, %v632
  %v634 = vpop.f32.mrf.mxu0
  %v635 = vadd.f32 %v365, %v634
  %v636 = vpop.f32.mrf.mxu0
  %v637 = vadd.f32 %v361, %v636
  %v638 = vpop.f32.mrf.mxu0
  %v639 = vadd.f32 %v365, %v638
  %640 = vdwg.mxu0
  %v641 = vmax.f32 %v563, 0.0
  %v642 = vmax.f32 %v565, 0.0
  %v643 = vmax.f32 %v567, 0.0
  %v644 = vmax.f32 %v569, 0.0
  %v645 = vmax.f32 %v573, 0.0
  %v646 = vmax.f32 %v575, 0.0
  %v647 = vmax.f32 %v577, 0.0
  %v648 = vmax.f32 %v579, 0.0
  %v649 = vmax.f32 %v583, 0.0
  %v650 = vmax.f32 %v585, 0.0
  %v651 = vmax.f32 %v587, 0.0
  %v652 = vmax.f32 %v589, 0.0
  %v653 = vmax.f32 %v593, 0.0
  %v654 = vmax.f32 %v595, 0.0
  %v655 = vmax.f32 %v597, 0.0
  %v656 = vmax.f32 %v599, 0.0
  %v657 = vmax.f32 %v603, 0.0
  %v658 = vmax.f32 %v605, 0.0
  %v659 = vmax.f32 %v607, 0.0
  %v660 = vmax.f32 %v609, 0.0
  %v661 = vmax.f32 %v613, 0.0
  %v662 = vmax.f32 %v615, 0.0
  %v663 = vmax.f32 %v617, 0.0
  %v664 = vmax.f32 %v619, 0.0
  %v665 = vmax.f32 %v623, 0.0
  %v666 = vmax.f32 %v625, 0.0
  %v667 = vmax.f32 %v627, 0.0
  %v668 = vmax.f32 %v629, 0.0
  %v669 = vmax.f32 %v633, 0.0
  %v670 = vmax.f32 %v635, 0.0
  %v671 = vmax.f32 %v637, 0.0
  %v672 = vmax.f32 %v639, 0.0
  %v673 = vrot.slane %v641, 4
  %v674 = vmax.f32 %v641, %v673
  %v675 = vrot.slane %v674, 2
  %v676 = vmax.f32 %v674, %v675
  %v677 = vrot.slane %v676, 1
  %v678 = vmax.f32 %v676, %v677
  %v679 = vrot.slane %v642, 4
  %v680 = vmax.f32 %v642, %v679
  %v681 = vrot.slane %v680, 2
  %v682 = vmax.f32 %v680, %v681
  %v683 = vrot.slane %v682, 1
  %v684 = vmax.f32 %v682, %v683
  %v685 = vrot.slane %v643, 4
  %v686 = vmax.f32 %v643, %v685
  %v687 = vrot.slane %v686, 2
  %v688 = vmax.f32 %v686, %v687
  %v689 = vrot.slane %v688, 1
  %v690 = vmax.f32 %v688, %v689
  %v691 = vrot.slane %v644, 4
  %v692 = vmax.f32 %v644, %v691
  %v693 = vrot.slane %v692, 2
  %v694 = vmax.f32 %v692, %v693
  %v695 = vrot.slane %v694, 1
  %v696 = vmax.f32 %v694, %v695
  %v697 = vrot.slane %v645, 4
  %v698 = vmax.f32 %v645, %v697
  %v699 = vrot.slane %v698, 2
  %v700 = vmax.f32 %v698, %v699
  %v701 = vrot.slane %v700, 1
  %v702 = vmax.f32 %v700, %v701
  %v703 = vrot.slane %v646, 4
  %v704 = vmax.f32 %v646, %v703
  %v705 = vrot.slane %v704, 2
  %v706 = vmax.f32 %v704, %v705
  %v707 = vrot.slane %v706, 1
  %v708 = vmax.f32 %v706, %v707
  %v709 = vrot.slane %v647, 4
  %v710 = vmax.f32 %v647, %v709
  %v711 = vrot.slane %v710, 2
  %v712 = vmax.f32 %v710, %v711
  %v713 = vrot.slane %v712, 1
  %v714 = vmax.f32 %v712, %v713
  %v715 = vrot.slane %v648, 4
  %v716 = vmax.f32 %v648, %v715
  %v717 = vrot.slane %v716, 2
  %v718 = vmax.f32 %v716, %v717
  %v719 = vrot.slane %v718, 1
  %v720 = vmax.f32 %v718, %v719
  %v721 = vrot.slane %v649, 4
  %v722 = vmax.f32 %v649, %v721
  %v723 = vrot.slane %v722, 2
  %v724 = vmax.f32 %v722, %v723
  %v725 = vrot.slane %v724, 1
  %v726 = vmax.f32 %v724, %v725
  %v727 = vrot.slane %v650, 4
  %v728 = vmax.f32 %v650, %v727
  %v729 = vrot.slane %v728, 2
  %v730 = vmax.f32 %v728, %v729
  %v731 = vrot.slane %v730, 1
  %v732 = vmax.f32 %v730, %v731
  %v733 = vrot.slane %v651, 4
  %v734 = vmax.f32 %v651, %v733
  %v735 = vrot.slane %v734, 2
  %v736 = vmax.f32 %v734, %v735
  %v737 = vrot.slane %v736, 1
  %v738 = vmax.f32 %v736, %v737
  %v739 = vrot.slane %v652, 4
  %v740 = vmax.f32 %v652, %v739
  %v741 = vrot.slane %v740, 2
  %v742 = vmax.f32 %v740, %v741
  %v743 = vrot.slane %v742, 1
  %v744 = vmax.f32 %v742, %v743
  %v745 = vrot.slane %v653, 4
  %v746 = vmax.f32 %v653, %v745
  %v747 = vrot.slane %v746, 2
  %v748 = vmax.f32 %v746, %v747
  %v749 = vrot.slane %v748, 1
  %v750 = vmax.f32 %v748, %v749
  %v751 = vrot.slane %v654, 4
  %v752 = vmax.f32 %v654, %v751
  %v753 = vrot.slane %v752, 2
  %v754 = vmax.f32 %v752, %v753
  %v755 = vrot.slane %v754, 1
  %v756 = vmax.f32 %v754, %v755
  %v757 = vrot.slane %v655, 4
  %v758 = vmax.f32 %v655, %v757
  %v759 = vrot.slane %v758, 2
  %v760 = vmax.f32 %v758, %v759
  %v761 = vrot.slane %v760, 1
  %v762 = vmax.f32 %v760, %v761
  %v763 = vrot.slane %v656, 4
  %v764 = vmax.f32 %v656, %v763
  %v765 = vrot.slane %v764, 2
  %v766 = vmax.f32 %v764, %v765
  %v767 = vrot.slane %v766, 1
  %v768 = vmax.f32 %v766, %v767
  %v769 = vrot.slane %v657, 4
  %v770 = vmax.f32 %v657, %v769
  %v771 = vrot.slane %v770, 2
  %v772 = vmax.f32 %v770, %v771
  %v773 = vrot.slane %v772, 1
  %v774 = vmax.f32 %v772, %v773
  %v775 = vrot.slane %v658, 4
  %v776 = vmax.f32 %v658, %v775
  %v777 = vrot.slane %v776, 2
  %v778 = vmax.f32 %v776, %v777
  %v779 = vrot.slane %v778, 1
  %v780 = vmax.f32 %v778, %v779
  %v781 = vrot.slane %v659, 4
  %v782 = vmax.f32 %v659, %v781
  %v783 = vrot.slane %v782, 2
  %v784 = vmax.f32 %v782, %v783
  %v785 = vrot.slane %v784, 1
  %v786 = vmax.f32 %v784, %v785
  %v787 = vrot.slane %v660, 4
  %v788 = vmax.f32 %v660, %v787
  %v789 = vrot.slane %v788, 2
  %v790 = vmax.f32 %v788, %v789
  %v791 = vrot.slane %v790, 1
  %v792 = vmax.f32 %v790, %v791
  %v793 = vrot.slane %v661, 4
  %v794 = vmax.f32 %v661, %v793
  %v795 = vrot.slane %v794, 2
  %v796 = vmax.f32 %v794, %v795
  %v797 = vrot.slane %v796, 1
  %v798 = vmax.f32 %v796, %v797
  %v799 = vrot.slane %v662, 4
  %v800 = vmax.f32 %v662, %v799
  %v801 = vrot.slane %v800, 2
  %v802 = vmax.f32 %v800, %v801
  %v803 = vrot.slane %v802, 1
  %v804 = vmax.f32 %v802, %v803
  %v805 = vrot.slane %v663, 4
  %v806 = vmax.f32 %v663, %v805
  %v807 = vrot.slane %v806, 2
  %v808 = vmax.f32 %v806, %v807
  %v809 = vrot.slane %v808, 1
  %v810 = vmax.f32 %v808, %v809
  %v811 = vrot.slane %v664, 4
  %v812 = vmax.f32 %v664, %v811
  %v813 = vrot.slane %v812, 2
  %v814 = vmax.f32 %v812, %v813
  %v815 = vrot.slane %v814, 1
  %v816 = vmax.f32 %v814, %v815
  %v817 = vrot.slane %v665, 4
  %v818 = vmax.f32 %v665, %v817
  %v819 = vrot.slane %v818, 2
  %v820 = vmax.f32 %v818, %v819
  %v821 = vrot.slane %v820, 1
  %v822 = vmax.f32 %v820, %v821
  %v823 = vrot.slane %v666, 4
  %v824 = vmax.f32 %v666, %v823
  %v825 = vrot.slane %v824, 2
  %v826 = vmax.f32 %v824, %v825
  %v827 = vrot.slane %v826, 1
  %v828 = vmax.f32 %v826, %v827
  %v829 = vrot.slane %v667, 4
  %v830 = vmax.f32 %v667, %v829
  %v831 = vrot.slane %v830, 2
  %v832 = vmax.f32 %v830, %v831
  %v833 = vrot.slane %v832, 1
  %v834 = vmax.f32 %v832, %v833
  %v835 = vrot.slane %v668, 4
  %v836 = vmax.f32 %v668, %v835
  %v837 = vrot.slane %v836, 2
  %v838 = vmax.f32 %v836, %v837
  %v839 = vrot.slane %v838, 1
  %v840 = vmax.f32 %v838, %v839
  %v841 = vrot.slane %v669, 4
  %v842 = vmax.f32 %v669, %v841
  %v843 = vrot.slane %v842, 2
  %v844 = vmax.f32 %v842, %v843
  %v845 = vrot.slane %v844, 1
  %v846 = vmax.f32 %v844, %v845
  %v847 = vrot.slane %v670, 4
  %v848 = vmax.f32 %v670, %v847
  %v849 = vrot.slane %v848, 2
  %v850 = vmax.f32 %v848, %v849
  %v851 = vrot.slane %v850, 1
  %v852 = vmax.f32 %v850, %v851
  %v853 = vrot.slane %v671, 4
  %v854 = vmax.f32 %v671, %v853
  %v855 = vrot.slane %v854, 2
  %v856 = vmax.f32 %v854, %v855
  %v857 = vrot.slane %v856, 1
  %v858 = vmax.f32 %v856, %v857
  %v859 = vrot.slane %v672, 4
  %v860 = vmax.f32 %v672, %v859
  %v861 = vrot.slane %v860, 2
  %v862 = vmax.f32 %v860, %v861
  %v863 = vrot.slane %v862, 1
  %v864 = vmax.f32 %v862, %v863
  %v865 = vpack.c.bf16 %v678, %v678
  %v866 = vpack.c.bf16 %v684, %v684
  %v867 = vpack.c.bf16 %v690, %v690
  %v868 = vpack.c.bf16 %v696, %v696
  %v869 = vpack.c.bf16 %v702, %v702
  %v870 = vpack.c.bf16 %v708, %v708
  %v871 = vpack.c.bf16 %v714, %v714
  %v872 = vpack.c.bf16 %v720, %v720
  %v873 = vpack.c.bf16 %v726, %v726
  %v874 = vpack.c.bf16 %v732, %v732
  %v875 = vpack.c.bf16 %v738, %v738
  %v876 = vpack.c.bf16 %v744, %v744
  %v877 = vpack.c.bf16 %v750, %v750
  %v878 = vpack.c.bf16 %v756, %v756
  %v879 = vpack.c.bf16 %v762, %v762
  %v880 = vpack.c.bf16 %v768, %v768
  %v881 = vpack.c.bf16 %v774, %v774
  %v882 = vpack.c.bf16 %v780, %v780
  %v883 = vpack.c.bf16 %v786, %v786
  %v884 = vpack.c.bf16 %v792, %v792
  %v885 = vpack.c.bf16 %v798, %v798
  %v886 = vpack.c.bf16 %v804, %v804
  %v887 = vpack.c.bf16 %v810, %v810
  %v888 = vpack.c.bf16 %v816, %v816
  %v889 = vpack.c.bf16 %v822, %v822
  %v890 = vpack.c.bf16 %v828, %v828
  %v891 = vpack.c.bf16 %v834, %v834
  %v892 = vpack.c.bf16 %v840, %v840
  %v893 = vpack.c.bf16 %v846, %v846
  %v894 = vpack.c.bf16 %v852, %v852
  %v895 = vpack.c.bf16 %v858, %v858
  %v896 = vpack.c.bf16 %v864, %v864
  %v929 = vunpack.c.l.b16 %v865
  %v930 = vunpack.c.l.b16 %v866
  %v931 = vunpack.c.l.b16 %v867
  %v932 = vunpack.c.l.b16 %v868
  %v933 = vunpack.c.l.b16 %v869
  %v934 = vunpack.c.l.b16 %v870
  %v935 = vunpack.c.l.b16 %v871
  %v936 = vunpack.c.l.b16 %v872
  %v937 = vunpack.c.l.b16 %v873
  %v938 = vunpack.c.l.b16 %v874
  %v939 = vunpack.c.l.b16 %v875
  %v940 = vunpack.c.l.b16 %v876
  %v941 = vunpack.c.l.b16 %v877
  %v942 = vunpack.c.l.b16 %v878
  %v943 = vunpack.c.l.b16 %v879
  %v944 = vunpack.c.l.b16 %v880
  %v945 = vunpack.c.l.b16 %v881
  %v946 = vunpack.c.l.b16 %v882
  %v947 = vunpack.c.l.b16 %v883
  %v948 = vunpack.c.l.b16 %v884
  %v949 = vunpack.c.l.b16 %v885
  %v950 = vunpack.c.l.b16 %v886
  %v951 = vunpack.c.l.b16 %v887
  %v952 = vunpack.c.l.b16 %v888
  %v953 = vunpack.c.l.b16 %v889
  %v954 = vunpack.c.l.b16 %v890
  %v955 = vunpack.c.l.b16 %v891
  %v956 = vunpack.c.l.b16 %v892
  %v957 = vunpack.c.l.b16 %v893
  %v958 = vunpack.c.l.b16 %v894
  %v959 = vunpack.c.l.b16 %v895
  %v960 = vunpack.c.l.b16 %v896
  %v961 = vpack.c.b16 %v930, %v929
  %v962 = vpack.c.b16 %v932, %v931
  %v963 = vpack.c.b16 %v934, %v933
  %v964 = vpack.c.b16 %v936, %v935
  %v965 = vpack.c.b16 %v938, %v937
  %v966 = vpack.c.b16 %v940, %v939
  %v967 = vpack.c.b16 %v942, %v941
  %v968 = vpack.c.b16 %v944, %v943
  %v969 = vpack.c.b16 %v946, %v945
  %v970 = vpack.c.b16 %v948, %v947
  %v971 = vpack.c.b16 %v950, %v949
  %v972 = vpack.c.b16 %v952, %v951
  %v973 = vpack.c.b16 %v954, %v953
  %v974 = vpack.c.b16 %v956, %v955
  %v975 = vpack.c.b16 %v958, %v957
  %v976 = vpack.c.b16 %v960, %v959
  %v977 = vunpack.c.l.b16 %v961
  %v978 = vunpack.c.h.b16 %v961
  %v979 = vunpack.c.l.b16 %v962
  %v980 = vunpack.c.h.b16 %v962
  %v981 = vunpack.c.l.b16 %v963
  %v982 = vunpack.c.h.b16 %v963
  %v983 = vunpack.c.l.b16 %v964
  %v984 = vunpack.c.h.b16 %v964
  %v985 = vunpack.c.l.b16 %v965
  %v986 = vunpack.c.h.b16 %v965
  %v987 = vunpack.c.l.b16 %v966
  %v988 = vunpack.c.h.b16 %v966
  %v989 = vunpack.c.l.b16 %v967
  %v990 = vunpack.c.h.b16 %v967
  %v991 = vunpack.c.l.b16 %v968
  %v992 = vunpack.c.h.b16 %v968
  %v993 = vunpack.c.l.b16 %v969
  %v994 = vunpack.c.h.b16 %v969
  %v995 = vunpack.c.l.b16 %v970
  %v996 = vunpack.c.h.b16 %v970
  %v997 = vunpack.c.l.b16 %v971
  %v998 = vunpack.c.h.b16 %v971
  %v999 = vunpack.c.l.b16 %v972
  %v1000 = vunpack.c.h.b16 %v972
  %v1001 = vunpack.c.l.b16 %v973
  %v1002 = vunpack.c.h.b16 %v973
  %v1003 = vunpack.c.l.b16 %v974
  %v1004 = vunpack.c.h.b16 %v974
  %v1005 = vunpack.c.l.b16 %v975
  %v1006 = vunpack.c.h.b16 %v975
  %v1007 = vunpack.c.l.b16 %v976
  %v1008 = vunpack.c.h.b16 %v976
  %vm1009 = vcmask 1041409
  %v1010 = vsel %vm1009, %v979, %v977
  %vm1011 = vcmask 1042434
  %v1012 = vsel %vm1011, %v981, %v1010
  %vm1013 = vcmask 1043459
  %v1014 = vsel %vm1013, %v983, %v1012
  %vm1015 = vcmask 1044484
  %v1016 = vsel %vm1015, %v985, %v1014
  %vm1017 = vcmask 1045509
  %v1018 = vsel %vm1017, %v987, %v1016
  %vm1019 = vcmask 1046534
  %v1020 = vsel %vm1019, %v989, %v1018
  %vm1021 = vcmask 1047559
  %v1022 = vsel %vm1021, %v991, %v1020
  %v1023 = vsel %vm1009, %v980, %v978
  %v1024 = vsel %vm1011, %v982, %v1023
  %v1025 = vsel %vm1013, %v984, %v1024
  %v1026 = vsel %vm1015, %v986, %v1025
  %v1027 = vsel %vm1017, %v988, %v1026
  %v1028 = vsel %vm1019, %v990, %v1027
  %v1029 = vsel %vm1021, %v992, %v1028
  %v1030 = vsel %vm1009, %v995, %v993
  %v1031 = vsel %vm1011, %v997, %v1030
  %v1032 = vsel %vm1013, %v999, %v1031
  %v1033 = vsel %vm1015, %v1001, %v1032
  %v1034 = vsel %vm1017, %v1003, %v1033
  %v1035 = vsel %vm1019, %v1005, %v1034
  %v1036 = vsel %vm1021, %v1007, %v1035
  %v1037 = vsel %vm1009, %v996, %v994
  %v1038 = vsel %vm1011, %v998, %v1037
  %v1039 = vsel %vm1013, %v1000, %v1038
  %v1040 = vsel %vm1015, %v1002, %v1039
  %v1041 = vsel %vm1017, %v1004, %v1040
  %v1042 = vsel %vm1019, %v1006, %v1041
  %v1043 = vsel %vm1021, %v1008, %v1042
  %v1044 = vpack.c.b16 %v1029, %v1022
  %v1045 = vpack.c.b16 %v1043, %v1036
  %1048 = vst [vmem:[%s5] sm:$0xff] %v1044
  %1049 = vst [vmem:[%s5 + $0x8] sm:$0xff] %v1045
  // Predicated region
  $region22: #{_lambda_.1} parent=0 // pred_check
    _
  $region23: #{_lambda_.1} parent=0 // pred_check_branch
    %1051 = sbr.rel (0) target = $region25
  $region24: #{_lambda_.1} parent=0 // pred_region
    _
  $region25: #{_lambda_.1} parent=0 // pred_fallthru
    _
  // Predicated region
  $region26: #{_lambda_.1} parent=0 // pred_check
    _
  $region27: #{_lambda_.1} parent=0 // pred_check_branch
    %1053 = sbr.rel (0) target = $region29
  $region28: #{_lambda_.1} parent=0 // pred_region
    _
  $region29: #{_lambda_.1} parent=0 // pred_fallthru
    _

</llo_original>
